<compile_context>
chip_gen: v5e
topology: v5e:2x2
jax: 0.10.0
libtpu: 0.0.40
codegen_flags: <defaults>
</compile_context>

<pallas_src>
import functools
import math

import jax
import jax.numpy as jnp
from jax.experimental import pallas as pl
from jax.experimental.pallas import tpu as pltpu


def _round_up(n: int, m: int) -> int:
    return ((n + m - 1) // m) * m


def _flow_logprob_kernel(xT_ref, w1t_ref, b1t_ref, wstT_ref, bstT_ref, out_ref,
                         *, hp: int, const: float):
    # Transposed layout: features on sublanes, batch tile (TB) on the 128-lane axis.
    x1T = xT_ref[pl.ds(0, hp), :]                     # [hp, TB]
    x2T = xT_ref[pl.ds(hp, hp), :]                    # [hp, TB]  (offset 8-aligned)

    # Conditioner MLP on x1 (MXU matmul, f32 accumulate; bias is a lane-broadcast add).
    hidT = jnp.tanh(
        jnp.dot(w1t_ref[...], x1T, preferred_element_type=jnp.float32)
        + b1t_ref[...]                                # [Hp, 1] broadcast over lanes
    )                                                 # [Hp, TB]

    # Fused [s | t] head: one matmul, split along sublanes at the 8-aligned hp.
    stT = (jnp.dot(wstT_ref[...], hidT, preferred_element_type=jnp.float32)
           + bstT_ref[...])                           # [2*hp, TB]
    sT = jnp.tanh(stT[:hp, :])                        # [hp, TB]  (bounded log-scale)
    tT = stT[hp:, :]                                  # [hp, TB]

    # Inverse affine coupling (z1 == x1).
    z2T = (x2T - tT) * jnp.exp(-sT)                   # [hp, TB]

    # Per-sample log-prob: single fused sublane reduction -> lane-dense [1, TB] row.
    #   log_prob = sum_j( -0.5*(x1_j^2 + z2_j^2) - s_j ) - 0.5*D*log(2*pi)
    combined = -0.5 * (x1T * x1T + z2T * z2T) - sT    # [hp, TB]
    out_ref[...] = jnp.sum(combined, axis=0, keepdims=True) + const


def forwarder_log_prob(x, params, *, tb: int = 2048):
    """x: [B, D] f32 -> log_prob: [B] f32  (Pallas TPU kernel, batch-tiled)."""
    w1, b1, ws, bs, wt, bt = params
    B, D = x.shape
    h = D // 2
    H = w1.shape[1]
    f32 = jnp.float32

    # Feature dims only need 8-alignment (sublane axis / full-array weight blocks).
    # Zero-padding is exact: padded rows provably contribute 0 to every sum.
    hp = _round_up(h, 8)
    Hp = _round_up(H, 8)

    # Batch tile: 128-lane aligned; keep >=4 grid steps when the batch allows
    # (v7x dual-TC sharding + DMA/compute pipelining); never over-pad tiny batches.
    tb = max(128, _round_up(tb, 128))
    b_lanes = _round_up(B, 128)
    tb = min(tb, b_lanes)
    while tb > 128 and b_lanes < 4 * tb:
        tb = max(128, _round_up(tb // 2, 128))
    b_pad = _round_up(B, tb)
    n_tiles = b_pad // tb

    # ---- wrapper-side layout plumbing (transpose + minimal pad) -------------
    # With hp == h this is just x.T plus batch padding (~1x of x, not 8x).
    # TODO(synk): for very large B this transpose could move in-kernel
    # (natural [tb, D] tiles + lax.dot_general contracting the feature axis)
    # to drop the extra HBM read+write pass over x entirely.
    xT = jnp.zeros((2 * hp, b_pad), f32)
    xT = xT.at[:h, :B].set(x[:, :h].T.astype(f32))
    xT = xT.at[hp:hp + h, :B].set(x[:, h:].T.astype(f32))

    # Conditioner weights, transposed + zero-padded (full-array blocks in VMEM).
    w1t = jnp.zeros((Hp, hp), f32).at[:H, :h].set(w1.T.astype(f32))
    b1t = jnp.zeros((Hp, 1), f32).at[:H, 0].set(b1.reshape(-1).astype(f32))

    # Fused [s | t] head: rows [0:hp] -> s, rows [hp:2*hp] -> t.
    wstT = jnp.zeros((2 * hp, Hp), f32)
    wstT = wstT.at[:h, :H].set(ws.T.astype(f32))
    wstT = wstT.at[hp:hp + h, :H].set(wt.T.astype(f32))
    bstT = jnp.zeros((2 * hp, 1), f32)
    bstT = bstT.at[:h, 0].set(bs.reshape(-1).astype(f32))
    bstT = bstT.at[hp:hp + h, 0].set(bt.reshape(-1).astype(f32))

    const = -0.5 * D * math.log(2.0 * math.pi)
    kernel = functools.partial(_flow_logprob_kernel, hp=hp, const=const)

    # Advisory cost hint so XLA schedules/overlaps this call inside larger jits.
    cost = pl.CostEstimate(
        flops=2 * b_pad * (Hp * hp + 2 * hp * Hp),
        transcendentals=b_pad * (Hp + 2 * hp),          # tanh(h), tanh(s), exp(-s)
        bytes_accessed=4 * (2 * hp * b_pad              # xT stream
                            + Hp * hp + Hp              # W1^T, b1
                            + 2 * hp * Hp + 2 * hp      # [Ws|Wt]^T, [bs|bt]
                            + b_pad),                   # output row
    )

    out = pl.pallas_call(
        kernel,
        out_shape=jax.ShapeDtypeStruct((1, b_pad), f32),
        grid=(n_tiles,),
        in_specs=[
            # Batch-tiled input: sublane dim == full array (8-aligned), lane dim = tb.
            pl.BlockSpec((2 * hp, tb), lambda i: (0, i)),
            # Weights/biases: full-array blocks (exempt from the (8,128) rule),
            # constant index_map -> VMEM-resident across all tiles.
            pl.BlockSpec((Hp, hp),     lambda i: (0, 0)),   # W1^T
            pl.BlockSpec((Hp, 1),      lambda i: (0, 0)),   # b1^T
            pl.BlockSpec((2 * hp, Hp), lambda i: (0, 0)),   # [Ws|Wt]^T
            pl.BlockSpec((2 * hp, 1),  lambda i: (0, 0)),   # [bs|bt]^T
        ],
        out_specs=pl.BlockSpec((1, tb), lambda i: (0, i)),  # lane-dense log-prob row
        compiler_params=pltpu.CompilerParams(
            dimension_semantics=("parallel",),              # megacore / dual-TC on v7x
            vmem_limit_bytes=32 * 1024 * 1024,              # explicit, safe everywhere
        ),
        cost_estimate=cost,
    )(xT, w1t, b1t, wstT, bstT)

    # Drop padded batch columns; squeeze to [B].
    return out[0, :B]


def _reference_log_prob(x, params):
    w1, b1, ws, bs, wt, bt = params
    h = x.shape[1] // 2
    x1, x2 = x[:, :h], x[:, h:]
    hid = jnp.tanh(x1 @ w1 + b1)
    s = jnp.tanh(hid @ ws + bs)
    t = hid @ wt + bt
    z1, z2 = x1, (x2 - t) * jnp.exp(-s)
    sq = jnp.sum(z1 * z1, axis=-1) + jnp.sum(z2 * z2, axis=-1)
    return (-0.5 * sq
            - 0.5 * x.shape[1] * math.log(2.0 * math.pi)
            - jnp.sum(s, axis=-1))


def make_params(key, D, H):
    h = D // 2
    k1, k2, k3 = jax.random.split(key, 3)
    w1 = 0.1 * jax.random.normal(k1, (h, H), dtype=jnp.float32)
    b1 = jnp.zeros((1, H), dtype=jnp.float32)
    ws = 0.1 * jax.random.normal(k2, (H, h), dtype=jnp.float32)
    bs = jnp.zeros((1, h), dtype=jnp.float32)
    wt = 0.1 * jax.random.normal(k3, (H, h), dtype=jnp.float32)
    bt = jnp.zeros((1, h), dtype=jnp.float32)
    return (w1, b1, ws, bs, wt, bt)


if __name__ == "__main__":
    # Small but non-trivial: B=200 -> tb clamps to 128 giving 2 grid tiles,
    # exercising multi-tile batch pipelining plus padded-batch handling.
    B, D, H = 200, 32, 32
    key = jax.random.PRNGKey(0)
    kx, kp = jax.random.split(key)
    x = jax.random.normal(kx, (B, D), dtype=jnp.float32)
    params = make_params(kp, D, H)

    log_prob = forwarder_log_prob(x, params)
    jax.block_until_ready(log_prob)

    ref = _reference_log_prob(x, params)
    assert log_prob.shape == (B,)
    assert jnp.allclose(log_prob, ref, atol=1e-3, rtol=1e-3), (
        float(jnp.max(jnp.abs(log_prob - ref))))

    print("KERNEL_OK")
</pallas_src>

<mosaic_0001>
module attributes {stable_mosaic.version = 11 : i64} {
  func.func @_flow_logprob_kernel(%arg0: i32, %arg1: memref<32x128xf32, #tpu.memory_space<vmem>>, %arg2: memref<32x16xf32, #tpu.memory_space<vmem>>, %arg3: memref<32x1xf32, #tpu.memory_space<vmem>>, %arg4: memref<32x32xf32, #tpu.memory_space<vmem>>, %arg5: memref<32x1xf32, #tpu.memory_space<vmem>>, %arg6: memref<1x128xf32, #tpu.memory_space<vmem>>) attributes {dimension_semantics = [#tpu.dimension_semantics<parallel>], iteration_bounds = array<i64: 2>, scalar_prefetch = 0 : i64, scratch_operands = 0 : i64, tpu.core_type = #tpu.core_type<tc>, window_params = [{transform_indices = @transform_0, window_bounds = array<i64: 32, 128>}, {pipeline_mode = #tpu.pipeline_mode<synchronous>, transform_indices = @transform_1, window_bounds = array<i64: 32, 16>}, {pipeline_mode = #tpu.pipeline_mode<synchronous>, transform_indices = @transform_2, window_bounds = array<i64: 32, 1>}, {pipeline_mode = #tpu.pipeline_mode<synchronous>, transform_indices = @transform_3, window_bounds = array<i64: 32, 32>}, {pipeline_mode = #tpu.pipeline_mode<synchronous>, transform_indices = @transform_4, window_bounds = array<i64: 32, 1>}, {transform_indices = @transform_5, window_bounds = array<i64: 1, 128>}]} {
    %c0 = arith.constant 0 : index
    %c0_0 = arith.constant 0 : index
    %0 = vector.load %arg1[%c0, %c0_0] : memref<32x128xf32, #tpu.memory_space<vmem>>, vector<16x128xf32>
    %c16 = arith.constant 16 : index
    %c0_1 = arith.constant 0 : index
    %1 = vector.load %arg1[%c16, %c0_1] : memref<32x128xf32, #tpu.memory_space<vmem>>, vector<16x128xf32>
    %c0_2 = arith.constant 0 : index
    %c0_3 = arith.constant 0 : index
    %2 = vector.load %arg2[%c0_2, %c0_3] : memref<32x16xf32, #tpu.memory_space<vmem>>, vector<32x16xf32>
    %cst = arith.constant dense<0.000000e+00> : vector<32x128xf32>
    %3 = tpu.matmul %2, %0, %cst {dimension_numbers = #tpu.dot_dimension_numbers<[1], [0], [0], [1], [0, 0, 1, 1], [], []>} : vector<32x16xf32>, vector<16x128xf32>, vector<32x128xf32> -> vector<32x128xf32>
    %c0_4 = arith.constant 0 : index
    %c0_5 = arith.constant 0 : index
    %4 = vector.load %arg3[%c0_4, %c0_5] : memref<32x1xf32, #tpu.memory_space<vmem>>, vector<32x1xf32>
    %5 = vector.broadcast %4 : vector<32x1xf32> to vector<32x128xf32>
    %6 = arith.addf %3, %5 : vector<32x128xf32>
    %7 = math.tanh %6 : vector<32x128xf32>
    %c0_6 = arith.constant 0 : index
    %c0_7 = arith.constant 0 : index
    %8 = vector.load %arg4[%c0_6, %c0_7] : memref<32x32xf32, #tpu.memory_space<vmem>>, vector<32x32xf32>
    %cst_8 = arith.constant dense<0.000000e+00> : vector<32x128xf32>
    %9 = tpu.matmul %8, %7, %cst_8 {dimension_numbers = #tpu.dot_dimension_numbers<[1], [0], [0], [1], [0, 0, 1, 1], [], []>} : vector<32x32xf32>, vector<32x128xf32>, vector<32x128xf32> -> vector<32x128xf32>
    %c0_9 = arith.constant 0 : index
    %c0_10 = arith.constant 0 : index
    %10 = vector.load %arg5[%c0_9, %c0_10] : memref<32x1xf32, #tpu.memory_space<vmem>>, vector<32x1xf32>
    %11 = vector.broadcast %10 : vector<32x1xf32> to vector<32x128xf32>
    %12 = arith.addf %9, %11 : vector<32x128xf32>
    %13 = vector.extract_strided_slice %12 {offsets = [0, 0], sizes = [16, 128], strides = [1, 1]} : vector<32x128xf32> to vector<16x128xf32>
    %14 = math.tanh %13 : vector<16x128xf32>
    %15 = vector.extract_strided_slice %12 {offsets = [16, 0], sizes = [16, 128], strides = [1, 1]} : vector<32x128xf32> to vector<16x128xf32>
    %16 = arith.subf %1, %15 : vector<16x128xf32>
    %cst_11 = arith.constant 0.000000e+00 : f32
    %17 = vector.broadcast %cst_11 : f32 to vector<16x128xf32>
    %18 = arith.subf %17, %14 : vector<16x128xf32>
    %19 = math.exp %18 : vector<16x128xf32>
    %20 = arith.mulf %16, %19 : vector<16x128xf32>
    %21 = arith.mulf %0, %0 : vector<16x128xf32>
    %22 = arith.mulf %20, %20 : vector<16x128xf32>
    %23 = arith.addf %21, %22 : vector<16x128xf32>
    %cst_12 = arith.constant -5.000000e-01 : f32
    %24 = vector.broadcast %cst_12 : f32 to vector<16x128xf32>
    %25 = arith.mulf %24, %23 : vector<16x128xf32>
    %26 = arith.subf %25, %14 : vector<16x128xf32>
    %cst_13 = arith.constant dense<0.000000e+00> : vector<128xf32>
    %27 = vector.multi_reduction <add>, %26, %cst_13 [0] : vector<16x128xf32> to vector<128xf32>
    %28 = vector.shape_cast %27 : vector<128xf32> to vector<1x128xf32>
    %cst_14 = arith.constant -29.4060326 : f32
    %29 = vector.broadcast %cst_14 : f32 to vector<1x128xf32>
    %30 = arith.addf %28, %29 : vector<1x128xf32>
    %c0_15 = arith.constant 0 : index
    %c0_16 = arith.constant 0 : index
    %31 = vector.load %arg6[%c0_15, %c0_16] : memref<1x128xf32, #tpu.memory_space<vmem>>, vector<1x128xf32>
    tpu.vector_store %arg6[%c0_15, %c0_16], %30 {strides = array<i32>} : memref<1x128xf32, #tpu.memory_space<vmem>>, vector<1x128xf32>,
    return
  }
  func.func @transform_0(%arg0: i32) -> (i32, i32) {
    %c0_i32 = arith.constant 0 : i32
    %c0_i32_0 = arith.constant 0 : i32
    return %c0_i32, %arg0 : i32, i32
  }
  func.func @transform_1(%arg0: i32) -> (i32, i32) {
    %c0_i32 = arith.constant 0 : i32
    %c0_i32_0 = arith.constant 0 : i32
    %c0_i32_1 = arith.constant 0 : i32
    return %c0_i32, %c0_i32_0 : i32, i32
  }
  func.func @transform_2(%arg0: i32) -> (i32, i32) {
    %c0_i32 = arith.constant 0 : i32
    %c0_i32_0 = arith.constant 0 : i32
    %c0_i32_1 = arith.constant 0 : i32
    return %c0_i32, %c0_i32_0 : i32, i32
  }
  func.func @transform_3(%arg0: i32) -> (i32, i32) {
    %c0_i32 = arith.constant 0 : i32
    %c0_i32_0 = arith.constant 0 : i32
    %c0_i32_1 = arith.constant 0 : i32
    return %c0_i32, %c0_i32_0 : i32, i32
  }
  func.func @transform_4(%arg0: i32) -> (i32, i32) {
    %c0_i32 = arith.constant 0 : i32
    %c0_i32_0 = arith.constant 0 : i32
    %c0_i32_1 = arith.constant 0 : i32
    return %c0_i32, %c0_i32_0 : i32, i32
  }
  func.func @transform_5(%arg0: i32) -> (i32, i32) {
    %c0_i32 = arith.constant 0 : i32
    %c0_i32_0 = arith.constant 0 : i32
    return %c0_i32, %arg0 : i32, i32
  }
}

</mosaic_0001>

<llo_original>
// kernel: tpu_custom_call.1
$region0: #{tpu_custom_call.1}
  #allocation0 [shape = 'u32[]', space=smem, size = 0x4, offset = 0x4, fixed_abs, tag = 'smem constant byte address 0x4 - core index']
  #allocation1 [shape = 'u32[72,128]{1,0:T(1,128)}', space=vmem, size = 0x9000, scoped, tag = 'internal scratch']
  %s0 = inlined_call_operand.vmem [shape: f32[32,256], index: 0, kind: input, shape index: {}]
  %s1 = inlined_call_operand.vmem [shape: f32[32,16], index: 1, kind: input, shape index: {}]
  %s2 = inlined_call_operand.vmem [shape: f32[32,1], index: 2, kind: input, shape index: {}]
  %s3 = inlined_call_operand.vmem [shape: f32[32,32], index: 3, kind: input, shape index: {}]
  %s4 = inlined_call_operand.vmem [shape: f32[32,1], index: 4, kind: input, shape index: {}]
  %s5 = inlined_call_operand.hbm [shape: f32[1,256], index: 5, kind: output, shape index: {}]
  %s6 = sld [smem:[#allocation0]]
  $region91: #{tpu_custom_call.1} parent=0
    _
  %s8 = ssub.s32 1, %s6
  %s9 = scalar_select 0, %s8, %s6
  $region1: #{tpu_custom_call.1} parent=0
    #allocation2 [shape = 'u8[32768]{0}', space=vmem, size = 0x8000, scoped, tag = 'input window, operand 0']
    #allocation3 [shape = 'u8[1024]{0}', space=vmem, size = 0x400, scoped, tag = 'output window, operand 0']
    #allocation4 [shape = 's32[2]{0}', space=sflag, size = 0x8, scoped, tag = 'scoped memory for tpu_custom_call.1']
    %10 = vsyncpa [#allocation4], 0
    %s11 = scalar_lea.sflag [#allocation4], 1
    %12 = vsyncpa %s11, 0
    loop: start=0, step=1, limit=4
    $region2: #{tpu_custom_call.1} parent=1 // loop_pre_header
      _
    $region3: #{tpu_custom_call.1} parent=1 // loop_header
      %s14 = sphi 0, %s18
      %p15 = scmp.ge.s32.totalorder %s14, 4
      %s24 = sphi 0, %s26
      %s27 = sphi 0, %s24
      %s28 = sphi 0, %s27
      %s44 = sphi 0, %s28
      %s48 = sphi 0, %s48
      %s50 = sphi 0, %s48
      %s51 = sphi 0, %s50
      %s65 = sphi 0, %s51
      %s69 = sphi 0, %s69
      %s71 = sphi 0, %s69
      %s72 = sphi 0, %s71
      %s86 = sphi 0, %s72
      %s90 = sphi 0, %s90
      %s92 = sphi 0, %s90
      %s93 = sphi 0, %s92
      %s107 = sphi 0, %s93
      %s111 = sphi 0, %s111
      %s113 = sphi 0, %s111
      %s114 = sphi 0, %s113
      %s128 = sphi 0, %s114
      %s134 = sphi 0, %s136
      %s137 = sphi 0, %s134
      %s138 = sphi 0, %s137
      %s154 = sphi 0, %s138
    $region4: #{tpu_custom_call.1} parent=1 // loop_header_branch
      %17 = sbr.rel (%p15) target = $region8
    $region5: #{tpu_custom_call.1} parent=1 // loop_body
      %s19 = ssub.s32 %s14, 1
      %s20 = ssub.s32 %s14, 2
      %s21 = sadd.s32 %s14, 1
      %s22 = ssub.s32 %s14, %s21
      %p23 = scmp.eq.s32.totalorder %s22, 0
      %s25 = sadd.s32 %s24, 1
      %s26 = scalar_select %p23, %s24, %s25
      %p29 = pneg %p23
      %p30 = scmp.eq.s32.totalorder %s14, 1
      %p31 = por %p29, %p30
      %p32 = scmp.ne.s32.totalorder %s24, %s27
      %p33 = scmp.eq.s32.totalorder %s14, 0
      %p34 = por %p32, %p33
      %p35 = scmp.ne.s32.totalorder %s24, %s27
      %p36 = scmp.eq.s32.totalorder %s19, 1
      %p37 = por %p35, %p36
      %p38 = scmp.ne.s32.totalorder %s27, %s28
      %p39 = scmp.eq.s32.totalorder %s19, 0
      %p40 = por %p38, %p39
      %p41 = scmp.ne.s32.totalorder %s27, %s28
      %p42 = scmp.eq.s32.totalorder %s20, 1
      %p43 = por %p41, %p42
      %p45 = scmp.ne.s32.totalorder %s28, %s44
      %p46 = scmp.eq.s32.totalorder %s20, 0
      %p47 = por %p45, %p46
      %s49 = sadd.s32 %s48, 1
      %p52 = scmp.eq.s32.totalorder %s14, 1
      %p53 = scmp.ne.s32.totalorder %s48, %s50
      %p54 = scmp.eq.s32.totalorder %s14, 0
      %p55 = por %p53, %p54
      %p56 = scmp.ne.s32.totalorder %s48, %s50
      %p57 = scmp.eq.s32.totalorder %s19, 1
      %p58 = por %p56, %p57
      %p59 = scmp.ne.s32.totalorder %s50, %s51
      %p60 = scmp.eq.s32.totalorder %s19, 0
      %p61 = por %p59, %p60
      %p62 = scmp.ne.s32.totalorder %s50, %s51
      %p63 = scmp.eq.s32.totalorder %s20, 1
      %p64 = por %p62, %p63
      %p66 = scmp.ne.s32.totalorder %s51, %s65
      %p67 = scmp.eq.s32.totalorder %s20, 0
      %p68 = por %p66, %p67
      %s70 = sadd.s32 %s69, 1
      %p73 = scmp.eq.s32.totalorder %s14, 1
      %p74 = scmp.ne.s32.totalorder %s69, %s71
      %p75 = scmp.eq.s32.totalorder %s14, 0
      %p76 = por %p74, %p75
      %p77 = scmp.ne.s32.totalorder %s69, %s71
      %p78 = scmp.eq.s32.totalorder %s19, 1
      %p79 = por %p77, %p78
      %p80 = scmp.ne.s32.totalorder %s71, %s72
      %p81 = scmp.eq.s32.totalorder %s19, 0
      %p82 = por %p80, %p81
      %p83 = scmp.ne.s32.totalorder %s71, %s72
      %p84 = scmp.eq.s32.totalorder %s20, 1
      %p85 = por %p83, %p84
      %p87 = scmp.ne.s32.totalorder %s72, %s86
      %p88 = scmp.eq.s32.totalorder %s20, 0
      %p89 = por %p87, %p88
      %s91 = sadd.s32 %s90, 1
      %p94 = scmp.eq.s32.totalorder %s14, 1
      %p95 = scmp.ne.s32.totalorder %s90, %s92
      %p96 = scmp.eq.s32.totalorder %s14, 0
      %p97 = por %p95, %p96
      %p98 = scmp.ne.s32.totalorder %s90, %s92
      %p99 = scmp.eq.s32.totalorder %s19, 1
      %p100 = por %p98, %p99
      %p101 = scmp.ne.s32.totalorder %s92, %s93
      %p102 = scmp.eq.s32.totalorder %s19, 0
      %p103 = por %p101, %p102
      %p104 = scmp.ne.s32.totalorder %s92, %s93
      %p105 = scmp.eq.s32.totalorder %s20, 1
      %p106 = por %p104, %p105
      %p108 = scmp.ne.s32.totalorder %s93, %s107
      %p109 = scmp.eq.s32.totalorder %s20, 0
      %p110 = por %p108, %p109
      %s112 = sadd.s32 %s111, 1
      %p115 = scmp.eq.s32.totalorder %s14, 1
      %p116 = scmp.ne.s32.totalorder %s111, %s113
      %p117 = scmp.eq.s32.totalorder %s14, 0
      %p118 = por %p116, %p117
      %p119 = scmp.ne.s32.totalorder %s111, %s113
      %p120 = scmp.eq.s32.totalorder %s19, 1
      %p121 = por %p119, %p120
      %p122 = scmp.ne.s32.totalorder %s113, %s114
      %p123 = scmp.eq.s32.totalorder %s19, 0
      %p124 = por %p122, %p123
      %p125 = scmp.ne.s32.totalorder %s113, %s114
      %p126 = scmp.eq.s32.totalorder %s20, 1
      %p127 = por %p125, %p126
      %p129 = scmp.ne.s32.totalorder %s114, %s128
      %p130 = scmp.eq.s32.totalorder %s20, 0
      %p131 = por %p129, %p130
      %s132 = ssub.s32 %s14, %s21
      %p133 = scmp.eq.s32.totalorder %s132, 0
      %s135 = sadd.s32 %s134, 1
      %s136 = scalar_select %p133, %s134, %s135
      %p139 = pneg %p133
      %p140 = scmp.eq.s32.totalorder %s14, 1
      %p141 = por %p139, %p140
      %p142 = scmp.ne.s32.totalorder %s134, %s137
      %p143 = scmp.eq.s32.totalorder %s14, 0
      %p144 = por %p142, %p143
      %p145 = scmp.ne.s32.totalorder %s134, %s137
      %p146 = scmp.eq.s32.totalorder %s19, 1
      %p147 = por %p145, %p146
      %p148 = scmp.ne.s32.totalorder %s137, %s138
      %p149 = scmp.eq.s32.totalorder %s19, 0
      %p150 = por %p148, %p149
      %p151 = scmp.ne.s32.totalorder %s137, %s138
      %p152 = scmp.eq.s32.totalorder %s20, 1
      %p153 = por %p151, %p152
      %p155 = scmp.ne.s32.totalorder %s138, %s154
      %p156 = scmp.eq.s32.totalorder %s20, 0
      %p157 = por %p155, %p156
      %p158 = scmp.le.s32.totalorder 1, %s14
      %p159 = scmp.lt.s32.totalorder %s14, 3
      %p160 = pnand %p158, %p159
      %p161 = pneg %p160
      // Predicated region
      $region9: #{tpu_custom_call.1} parent=5 // pred_check
        _
      $region10: #{tpu_custom_call.1} parent=5 // pred_check_branch
        %163 = sbr.rel (%p160) target = $region12
      $region11: #{tpu_custom_call.1} parent=5 // pred_region
        %s164 = ssub.s32 %s14, 1
        // Predicated region
        $region13: #{tpu_custom_call.1} parent=11 // pred_check
          %p165 = pneg %p61
        $region14: #{tpu_custom_call.1} parent=11 // pred_check_branch
          %167 = sbr.rel (%p165) target = $region16
        $region15: #{tpu_custom_call.1} parent=11 // pred_region
          _
        $region16: #{tpu_custom_call.1} parent=11 // pred_fallthru
          _
        // Predicated region
        $region17: #{tpu_custom_call.1} parent=11 // pred_check
          %p168 = pneg %p82
        $region18: #{tpu_custom_call.1} parent=11 // pred_check_branch
          %170 = sbr.rel (%p168) target = $region20
        $region19: #{tpu_custom_call.1} parent=11 // pred_region
          _
        $region20: #{tpu_custom_call.1} parent=11 // pred_fallthru
          _
        // Predicated region
        $region21: #{tpu_custom_call.1} parent=11 // pred_check
          %p171 = pneg %p103
        $region22: #{tpu_custom_call.1} parent=11 // pred_check_branch
          %173 = sbr.rel (%p171) target = $region24
        $region23: #{tpu_custom_call.1} parent=11 // pred_region
          _
        $region24: #{tpu_custom_call.1} parent=11 // pred_fallthru
          _
        // Predicated region
        $region25: #{tpu_custom_call.1} parent=11 // pred_check
          %p174 = pneg %p124
        $region26: #{tpu_custom_call.1} parent=11 // pred_check_branch
          %176 = sbr.rel (%p174) target = $region28
        $region27: #{tpu_custom_call.1} parent=11 // pred_region
          _
        $region28: #{tpu_custom_call.1} parent=11 // pred_fallthru
          _
      $region12: #{tpu_custom_call.1} parent=5 // pred_fallthru
        _
      %p177 = scmp.lt.s32.totalorder %s14, 2
      // Predicated region
      $region29: #{tpu_custom_call.1} parent=5 // pred_check
        %p178 = pneg %p177
      $region30: #{tpu_custom_call.1} parent=5 // pred_check_branch
        %180 = sbr.rel (%p178) target = $region32
      $region31: #{tpu_custom_call.1} parent=5 // pred_region
        // Predicated region
        $region33: #{tpu_custom_call.1} parent=31 // pred_check
          %p181 = pneg %p34
        $region34: #{tpu_custom_call.1} parent=31 // pred_check_branch
          %183 = sbr.rel (%p181) target = $region36
        $region35: #{tpu_custom_call.1} parent=31 // pred_region
          %s184 = sand.u32 %s24, 1
          %s185 = sand.u32 %s24, 1
          %s186 = smul.addr %s185, 32
          %s187 = scalar_lea.vmem [#allocation2], %s186
          %s188 = smul.addr %s14, 8
          %s189 = scalar_lea.vmem %s0, %s188
          // Predicated region
          $region37: #{tpu_custom_call.1} parent=35 // pred_check
            _
          $region38: #{tpu_custom_call.1} parent=35 // pred_check_branch
            %191 = sbr.rel (0) target = $region40
          $region39: #{tpu_custom_call.1} parent=35 // pred_region
            // Predicated region
            $region41: #{tpu_custom_call.1} parent=39 // pred_check
              _
            $region42: #{tpu_custom_call.1} parent=39 // pred_check_branch
              %193 = sbr.rel (0) target = $region44
            $region43: #{tpu_custom_call.1} parent=39 // pred_region
              // Predicated region
              $region56: #{tpu_custom_call.1} parent=43 // pred_check
                _
              $region57: #{tpu_custom_call.1} parent=43 // pred_check_branch
                %215 = sbr.rel (0) target = $region59
              $region58: #{tpu_custom_call.1} parent=43 // pred_region
                loop: start=0, step=1, limit=1
                $region60: #{tpu_custom_call.1} parent=58 // loop_pre_header
                  _
                $region61: #{tpu_custom_call.1} parent=58 // loop_header
                  %s217 = sphi 0, %s221
                  %p218 = scmp.ge.s32.totalorder %s217, 1
                  %s222 = sphi %s189, %s189
                  %s223 = sphi %s187, %s187
                $region62: #{tpu_custom_call.1} parent=58 // loop_header_branch
                  %220 = sbr.rel (%p218) target = $region66
                $region63: #{tpu_custom_call.1} parent=58 // loop_body
                  %v224 = vld [vmem:[%s222] sm:$0xff]
                  %225 = vst [vmem:[%s223] sm:$0xff] %v224
                  %v226 = vld [vmem:[%s222 + $0x10] sm:$0xff]
                  %227 = vst [vmem:[%s223 + $0x8] sm:$0xff] %v226
                  %v228 = vld [vmem:[%s222 + $0x20] sm:$0xff]
                  %229 = vst [vmem:[%s223 + $0x10] sm:$0xff] %v228
                  %v230 = vld [vmem:[%s222 + $0x30] sm:$0xff]
                  %231 = vst [vmem:[%s223 + $0x18] sm:$0xff] %v230
                $region64: #{tpu_custom_call.1} parent=58 // loop_footer
                  %s221 = sadd.s32 1, %s217
                $region65: #{tpu_custom_call.1} parent=58 // loop_footer_branch
                  %216 = sbr.rel target = $region61
                $region66: #{tpu_custom_call.1} parent=58 // loop_exit
                  _
              $region59: #{tpu_custom_call.1} parent=43 // pred_fallthru
                _
              // Predicated region
              $region67: #{tpu_custom_call.1} parent=43 // pred_check
                _
              $region68: #{tpu_custom_call.1} parent=43 // pred_check_branch
                %233 = sbr.rel target = $region70
              $region69: #{tpu_custom_call.1} parent=43 // pred_region
                _
              $region70: #{tpu_custom_call.1} parent=43 // pred_fallthru
                _
            $region44: #{tpu_custom_call.1} parent=39 // pred_fallthru
              _
            // Predicated region
            $region45: #{tpu_custom_call.1} parent=39 // pred_check
              _
            $region46: #{tpu_custom_call.1} parent=39 // pred_check_branch
              %195 = sbr.rel target = $region48
            $region47: #{tpu_custom_call.1} parent=39 // pred_region
              %s197 = ssub.s32 256, 1
              loop: start=0, step=1, limit=1
              $region49: #{tpu_custom_call.1} parent=47 // loop_pre_header
                _
              $region50: #{tpu_custom_call.1} parent=47 // loop_header
                %s199 = sphi 0, %s203
                %p200 = scmp.ge.s32.totalorder %s199, 1
                %s204 = sphi %s189, %s189
                %s205 = sphi %s187, %s187
              $region51: #{tpu_custom_call.1} parent=47 // loop_header_branch
                %202 = sbr.rel (%p200) target = $region55
              $region52: #{tpu_custom_call.1} parent=47 // loop_body
                %v206 = vld [vmem:[%s204] sm:%s197]
                %207 = vst [vmem:[%s205] sm:%s197] %v206
                %v208 = vld [vmem:[%s204 + $0x10] sm:%s197]
                %209 = vst [vmem:[%s205 + $0x8] sm:%s197] %v208
                %v210 = vld [vmem:[%s204 + $0x20] sm:%s197]
                %211 = vst [vmem:[%s205 + $0x10] sm:%s197] %v210
                %v212 = vld [vmem:[%s204 + $0x30] sm:%s197]
                %213 = vst [vmem:[%s205 + $0x18] sm:%s197] %v212
              $region53: #{tpu_custom_call.1} parent=47 // loop_footer
                %s203 = sadd.s32 1, %s199
              $region54: #{tpu_custom_call.1} parent=47 // loop_footer_branch
                %198 = sbr.rel target = $region50
              $region55: #{tpu_custom_call.1} parent=47 // loop_exit
                _
            $region48: #{tpu_custom_call.1} parent=39 // pred_fallthru
              _
          $region40: #{tpu_custom_call.1} parent=35 // pred_fallthru
            _
          %234 = vnop
        $region36: #{tpu_custom_call.1} parent=31 // pred_fallthru
          _
      $region32: #{tpu_custom_call.1} parent=5 // pred_fallthru
        _
      %p235 = scmp.le.s32.totalorder 1, %s14
      %p236 = scmp.lt.s32.totalorder %s14, 3
      %p237 = pnand %p235, %p236
      %p238 = pneg %p237
      // Predicated region
      $region71: #{tpu_custom_call.1} parent=5 // pred_check
        _
      $region72: #{tpu_custom_call.1} parent=5 // pred_check_branch
        %240 = sbr.rel (%p237) target = $region74
      $region73: #{tpu_custom_call.1} parent=5 // pred_region
        %s241 = ssub.s32 %s14, 1
        %s242 = sand.u32 %s27, 1
        %s243 = sand.u32 %s27, 1
        %s244 = smul.addr %s243, 32
        %s245 = scalar_lea.vmem [#allocation2], %s244
        // Predicated region
        $region75: #{tpu_custom_call.1} parent=73 // pred_check
          %p246 = pneg %p40
        $region76: #{tpu_custom_call.1} parent=73 // pred_check_branch
          %248 = sbr.rel (%p246) target = $region78
        $region77: #{tpu_custom_call.1} parent=73 // pred_region
          _
        $region78: #{tpu_custom_call.1} parent=73 // pred_fallthru
          _
        %s249 = sand.u32 %s27, 1
        %s250 = sand.u32 %s27, 1
        %s251 = smul.addr %s250, 32
        %s252 = scalar_lea.vmem [#allocation2], %s251
        %p253 = pneg %p40
        %p254 = pneg %p37
        %p255 = pneg %p61
        %p256 = pneg %p58
        %p257 = pneg %p82
        %p258 = pneg %p79
        %p259 = pneg %p103
        %p260 = pneg %p100
        %p261 = pneg %p124
        %p262 = pneg %p121
        %p263 = pneg %p150
        %p264 = pneg %p147
        %s265 = sand.u32 %s137, 1
        %s266 = scalar_lea.sflag [#allocation4], %s265
        %s267 = sand.u32 %s137, 1
        %s268 = scalar_lea.vmem [#allocation3], %s267
        %v269 = vld [vmem:[%s245] sm:$0xff]
        %v270 = vld [vmem:[%s245 + $0x8] sm:$0xff]
        %v271 = vld [vmem:[%s245 + $0x10] sm:$0xff]
        %v272 = vld [vmem:[%s245 + $0x18] sm:$0xff]
        %v273 = vld [vmem:[%s1] sm:$0xff]
        %v274 = vld [vmem:[%s1 + $0x8] sm:$0xff]
        %v275 = vld [vmem:[%s1 + $0x10] sm:$0xff]
        %v276 = vld [vmem:[%s1 + $0x18] sm:$0xff]
        %v277 = vld [vmem:[%s2] sm:$0xff]
        %v278 = vld [vmem:[%s2 + $0x8] sm:$0xff]
        %v279 = vld [vmem:[%s2 + $0x10] sm:$0xff]
        %v280 = vld [vmem:[%s2 + $0x18] sm:$0xff]
        %282 = vset.pattern.permute.xlu0 0
        %283 = vperm.xlu0 %282, %v277
        %v284 = vpop.permute.xlu0 %283
        %287 = vset.pattern.permute.xlu0 0
        %288 = vperm.xlu0 %287, %v278
        %v289 = vpop.permute.xlu0 %288
        %292 = vset.pattern.permute.xlu0 0
        %293 = vperm.xlu0 %292, %v279
        %v294 = vpop.permute.xlu0 %293
        %297 = vset.pattern.permute.xlu0 0
        %298 = vperm.xlu0 %297, %v280
        %v299 = vpop.permute.xlu0 %298
        %vm301 = vcmask 130048
        %v303 = vsel %vm301, %v273, 0
        %v306 = vsel %vm301, %v274, 0
        %v309 = vsel %vm301, %v275, 0
        %v312 = vsel %vm301, %v276, 0
        %314 = vmatpush.msra.mxu0 0.0
        %315 = vmatpush.msra.mxu0 0.0
        %316 = vmatpush.msra.mxu0 0.0
        %317 = vmatpush.msra.mxu0 0.0
        %318 = vmatpush.msra.mxu0 0.0
        %319 = vmatpush.msra.mxu0 0.0
        %320 = vmatpush.msra.mxu0 0.0
        %321 = vmatpush.msra.mxu0 0.0
        %322 = vmatpush.msra.mxu0 0.0
        %323 = vmatpush.msra.mxu0 0.0
        %324 = vmatpush.msra.mxu0 0.0
        %325 = vmatpush.msra.mxu0 0.0
        %326 = vmatpush.msra.mxu0 0.0
        %327 = vmatpush.msra.mxu0 0.0
        %328 = vmatpush.msra.mxu0 %v270
        %329 = vmatpush.msra.mxu0 %v269
        %330 = vmatmul.f32.gmra.mxu0 %v303
        %v331 = vpop.f32.mrf.mxu0
        %v332 = vadd.f32 %v284, %v331
        %333 = vmatmul.f32.gmra.mxu0 %v306
        %v334 = vpop.f32.mrf.mxu0
        %v335 = vadd.f32 %v289, %v334
        %336 = vmatmul.f32.gmra.mxu0 %v309
        %v337 = vpop.f32.mrf.mxu0
        %v338 = vadd.f32 %v294, %v337
        %339 = vmatmul.f32.gmra.mxu0 %v312
        %v340 = vpop.f32.mrf.mxu0
        %v341 = vadd.f32 %v299, %v340
        %342 = vdwg.mxu0
        %v343 = vtanh.pop %v332
        %v344 = vtanh.pop %v335
        %v345 = vtanh.pop %v338
        %v346 = vtanh.pop %v341
        %v347 = vld [vmem:[%s3] sm:$0xff]
        %v348 = vld [vmem:[%s3 + $0x8] sm:$0xff]
        %v349 = vld [vmem:[%s3 + $0x10] sm:$0xff]
        %v350 = vld [vmem:[%s3 + $0x18] sm:$0xff]
        %v351 = vld [vmem:[%s4] sm:$0xff]
        %v352 = vld [vmem:[%s4 + $0x8] sm:$0xff]
        %v353 = vld [vmem:[%s4 + $0x10] sm:$0xff]
        %v354 = vld [vmem:[%s4 + $0x18] sm:$0xff]
        %356 = vset.pattern.permute.xlu0 0
        %357 = vperm.xlu0 %356, %v351
        %v358 = vpop.permute.xlu0 %357
        %361 = vset.pattern.permute.xlu0 0
        %362 = vperm.xlu0 %361, %v352
        %v363 = vpop.permute.xlu0 %362
        %366 = vset.pattern.permute.xlu0 0
        %367 = vperm.xlu0 %366, %v353
        %v368 = vpop.permute.xlu0 %367
        %371 = vset.pattern.permute.xlu0 0
        %372 = vperm.xlu0 %371, %v354
        %v373 = vpop.permute.xlu0 %372
        %vm375 = vcmask 261120
        %v377 = vsel %vm375, %v347, 0
        %v380 = vsel %vm375, %v348, 0
        %v383 = vsel %vm375, %v349, 0
        %v386 = vsel %vm375, %v350, 0
        %388 = vmatpush.msra.mxu0 0.0
        %389 = vmatpush.msra.mxu0 0.0
        %390 = vmatpush.msra.mxu0 0.0
        %391 = vmatpush.msra.mxu0 0.0
        %392 = vmatpush.msra.mxu0 0.0
        %393 = vmatpush.msra.mxu0 0.0
        %394 = vmatpush.msra.mxu0 0.0
        %395 = vmatpush.msra.mxu0 0.0
        %396 = vmatpush.msra.mxu0 0.0
        %397 = vmatpush.msra.mxu0 0.0
        %398 = vmatpush.msra.mxu0 0.0
        %399 = vmatpush.msra.mxu0 0.0
        %400 = vmatpush.msra.mxu0 %v346
        %401 = vmatpush.msra.mxu0 %v345
        %402 = vmatpush.msra.mxu0 %v344
        %403 = vmatpush.msra.mxu0 %v343
        %404 = vmatmul.f32.gmra.mxu0 %v377
        %v405 = vpop.f32.mrf.mxu0
        %v406 = vadd.f32 %v358, %v405
        %407 = vmatmul.f32.gmra.mxu0 %v380
        %v408 = vpop.f32.mrf.mxu0
        %v409 = vadd.f32 %v363, %v408
        %410 = vmatmul.f32.gmra.mxu0 %v383
        %v411 = vpop.f32.mrf.mxu0
        %v412 = vadd.f32 %v368, %v411
        %413 = vmatmul.f32.gmra.mxu0 %v386
        %v414 = vpop.f32.mrf.mxu0
        %v415 = vadd.f32 %v373, %v414
        %416 = vdwg.mxu0
        %v417 = vtanh.pop %v406
        %v418 = vtanh.pop %v409
        %v419 = vsub.f32 %v271, %v412
        %v420 = vsub.f32 %v272, %v415
        %v421 = vsub.f32 0.0, %v417
        %v422 = vsub.f32 0.0, %v418
        %v423 = vmul.f32 %v421, 1.442695
        %v424 = vpow.pop %v423
        %v425 = vmul.f32 %v422, 1.442695
        %v426 = vpow.pop %v425
        %v427 = vmul.f32 %v419, %v424
        %v428 = vmul.f32 %v420, %v426
        %v429 = vmul.f32 %v269, %v269
        %v430 = vmul.f32 %v270, %v270
        %v431 = vmul.f32 %v427, %v427
        %v432 = vmul.f32 %v428, %v428
        %v433 = vadd.f32 %v429, %v431
        %v434 = vadd.f32 %v430, %v432
        %v435 = vmul.f32 %v433, -0.5
        %v436 = vmul.f32 %v434, -0.5
        %v437 = vsub.f32 %v435, %v417
        %v438 = vsub.f32 %v436, %v418
        %v439 = vadd.f32 %v437, %v438
        %v440 = vrot.slane %v439, 4
        %v441 = vadd.f32 %v439, %v440
        %v442 = vrot.slane %v441, 2
        %v443 = vadd.f32 %v441, %v442
        %v444 = vrot.slane %v443, 1
        %v445 = vadd.f32 %v443, %v444
        %v446 = vadd.f32 %v445, -29.406033
        %447 = vst [vmem:[%s268] sm:$0x1] %v446
        %s448 = sand.u32 %s137, 1
        %s449 = scalar_lea.sflag [#allocation4], %s448
        %s450 = sand.u32 %s137, 1
        %s451 = scalar_lea.vmem [#allocation3], %s450
        // Predicated region
        $region79: #{tpu_custom_call.1} parent=73 // pred_check
          %p452 = pneg %p147
        $region80: #{tpu_custom_call.1} parent=73 // pred_check_branch
          %454 = sbr.rel (%p452) target = $region82
        $region81: #{tpu_custom_call.1} parent=73 // pred_region
          %456 = vsyncadd %s449, 0
          %s457 = scalar_lea.hbm %s5, %s19
          %s459 = sshll.u32 %s451, 4
          %s460 = int_to_ptr.vmem [resolvable:$true] %s459
          %s461 = sshll.u32 %s457, 4
          %s462 = int_to_ptr.hbm [resolvable:$true] %s461
          %464 = dma.vmem_to_hbm [thread:$0]  %s460, 16, %s462, %s449
        $region82: #{tpu_custom_call.1} parent=73 // pred_fallthru
          _
      $region74: #{tpu_custom_call.1} parent=5 // pred_fallthru
        _
      %p465 = scmp.le.s32.totalorder 2, %s14
      // Predicated region
      $region83: #{tpu_custom_call.1} parent=5 // pred_check
        %p466 = pneg %p465
      $region84: #{tpu_custom_call.1} parent=5 // pred_check_branch
        %468 = sbr.rel (%p466) target = $region86
      $region85: #{tpu_custom_call.1} parent=5 // pred_region
        %s469 = ssub.s32 %s14, 2
        // Predicated region
        $region87: #{tpu_custom_call.1} parent=85 // pred_check
          %p470 = pneg %p153
        $region88: #{tpu_custom_call.1} parent=85 // pred_check_branch
          %472 = sbr.rel (%p470) target = $region90
        $region89: #{tpu_custom_call.1} parent=85 // pred_region
          %s473 = sand.u32 %s138, 1
          %s474 = scalar_lea.sflag [#allocation4], %s473
          %s475 = sand.u32 %s138, 1
          %s476 = scalar_lea.vmem [#allocation3], %s475
          %478 = dma.done %s474, 16
        $region90: #{tpu_custom_call.1} parent=85 // pred_fallthru
          _
      $region86: #{tpu_custom_call.1} parent=5 // pred_fallthru
        _
    $region6: #{tpu_custom_call.1} parent=1 // loop_footer
      %s18 = sadd.s32 1, %s14
    $region7: #{tpu_custom_call.1} parent=1 // loop_footer_branch
      %13 = sbr.rel target = $region3
    $region8: #{tpu_custom_call.1} parent=1 // loop_exit
      _
    %479 = vsyncpa [#allocation4], 1
    %s480 = scalar_lea.sflag [#allocation4], 1
    %481 = vsyncpa %s480, 1

</llo_original>
